<compile_context>
chip_gen: v5e
topology: v5e:2x2
jax: 0.10.0
libtpu: 0.0.40
codegen_flags: <defaults>
</compile_context>

<pallas_src>
import functools
import math

import jax
import jax.numpy as jnp
from jax import lax
from jax.experimental import pallas as pl
from jax.experimental.pallas import tpu as pltpu


def ascn_kernel(x_ref, g_ref, wv_ref, bv_ref, wt_ref, gamma_ref, beta_ref,
                out_ref, *, batch, npts):
    # Lane-dense activations: [C, B*N] (B*N = 128 at the shipped shape).
    x = x_ref[...]            # [C, BN] f32
    G = g_ref[...]            # [C, C]   Gram matrix (wq^T wq / sqrt(da))
    wv = wv_ref[...]          # [C, C]
    bv = bv_ref[...]          # [C, 1]
    wt = wt_ref[...]          # [C, C]
    gamma = gamma_ref[...]    # [C, 1]
    beta = beta_ref[...]      # [C, 1]

    N = npts
    BN = x.shape[1]

    # 1x1 convs on the batch-folded layout: single lane-dense matmuls.
    # v_conv (with bias) and the Gram-projected activations.
    xv = jnp.dot(wv, x, preferred_element_type=jnp.float32) + bv      # [C, BN]
    gx = jnp.dot(G, x, preferred_element_type=jnp.float32)            # [C, BN]
    # NOTE(v5e): casting x / G / wv / wt / attention to bf16 (keeping f32
    # accumulation) would roughly double MXU throughput if the accuracy budget
    # allows; kept in f32 here to match the PyTorch reference bit-for-bit-ish.

    # Attention is inherently per-batch ([N, N] per sample); batch is small and
    # static, so unroll it with 2-D MXU matmuls.
    xs_parts = []
    for b in range(batch):
        xb = x[:, b * N:(b + 1) * N]      # [C, N]
        gxb = gx[:, b * N:(b + 1) * N]    # [C, N]
        xvb = xv[:, b * N:(b + 1) * N]    # [C, N]

        # energy[n, m] = x_b[:, n]^T G x_b[:, m]   (contraction over channels)
        energy = lax.dot_general(
            xb, gxb,
            dimension_numbers=(((0,), (0,)), ((), ())),
            preferred_element_type=jnp.float32)                       # [N, N]

        # softmax over the last axis (keys); divide via EUP reciprocal.
        e_max = jnp.max(energy, axis=-1, keepdims=True)
        p = jnp.exp(energy - e_max)
        denom = jnp.sum(p, axis=-1, keepdims=True)
        attn = p * pl.reciprocal(denom, approx=True)                  # [N, N]

        # x_s = x_v @ attention   (contracts over the query index of attn)
        xs_parts.append(
            jnp.dot(xvb, attn, preferred_element_type=jnp.float32))   # [C, N]

    xs = jnp.concatenate(xs_parts, axis=1)                            # [C, BN]

    # trans_conv; its bias is exactly cancelled by the training-mode BatchNorm
    # mean subtraction, so it is omitted.
    t = jnp.dot(wt, xs, preferred_element_type=jnp.float32)           # [C, BN]

    # BatchNorm1d (training mode => biased batch statistics over B*N), one pass.
    inv_cnt = 1.0 / float(BN)
    s1 = jnp.sum(t, axis=1, keepdims=True)                            # [C, 1]
    s2 = jnp.sum(t * t, axis=1, keepdims=True)                        # [C, 1]
    mean = s1 * inv_cnt
    var = s2 * inv_cnt - mean * mean
    scale = lax.rsqrt(var + 1e-5) * gamma                             # [C, 1]
    t_norm = (t - mean) * scale + beta                                # [C, BN]

    # ReLU + residual with x_v; lane-dense [C, B*N] store (unmasked vst).
    out_ref[...] = (xv + jnp.maximum(t_norm, 0.0)).astype(out_ref.dtype)


@jax.jit
def ascn_forward(x, params):
    """x: [B, C, N] float32 -> [B, C, N] float32 (ASCN forward, training-mode BN)."""
    B, C, N = x.shape
    da = params['wq'].shape[0]

    # Precompute the Gram matrix once (trace-time / XLA, tiny): folds the
    # shared q/k projection and the 1/sqrt(da) scale into a single [C, C] weight.
    G = jnp.dot(params['wq'].T, params['wq'],
                preferred_element_type=jnp.float32) / math.sqrt(da)

    # Wrapper-side layout plumbing: fold batch into the lane dim -> [C, B*N].
    x2 = jnp.transpose(x, (1, 0, 2)).reshape(C, B * N)

    vspec = pl.BlockSpec(memory_space=pltpu.MemorySpace.VMEM)
    out2 = pl.pallas_call(
        functools.partial(ascn_kernel, batch=B, npts=N),
        out_shape=jax.ShapeDtypeStruct((C, B * N), jnp.float32),
        in_specs=[vspec] * 7,
        out_specs=vspec,
        compiler_params=pltpu.CompilerParams(
            vmem_limit_bytes=32 * 1024 * 1024),
    )(x2, G, params['wv'], params['bv'], params['wt'],
      params['gamma'], params['beta'])

    # Back to the module's NCW layout.
    return jnp.transpose(out2.reshape(C, B, N), (1, 0, 2))


def init_params(channels, key):
    """Deterministic synthetic parameters matching ASCN.__init__ shapes."""
    da = channels // 4
    k = jax.random.split(key, 5)
    # Conv1d weights with kernel_size=1 -> stored as [out_ch, in_ch].
    wq = jax.random.normal(k[0], (da, channels), jnp.float32) / math.sqrt(channels)
    wv = jax.random.normal(k[1], (channels, channels), jnp.float32) / math.sqrt(channels)
    bv = jax.random.normal(k[2], (channels, 1), jnp.float32) * 0.1
    wt = jax.random.normal(k[3], (channels, channels), jnp.float32) / math.sqrt(channels)
    # trans_conv bias: kept for module-shape fidelity, but it has exactly zero
    # effect on the output under training-mode BatchNorm, so it is not passed
    # to the kernel.
    bt = jax.random.normal(k[4], (channels, 1), jnp.float32) * 0.1
    gamma = jnp.ones((channels, 1), jnp.float32)   # BatchNorm weight
    beta = jnp.zeros((channels, 1), jnp.float32)   # BatchNorm bias
    return dict(wq=wq, wv=wv, bv=bv, wt=wt, bt=bt, gamma=gamma, beta=beta)


if __name__ == "__main__":
    B, C, N = 2, 32, 64          # x: [B, de, N]; B*N = 128 (lane-dense)
    key = jax.random.PRNGKey(0)
    kx, kp = jax.random.split(key)
    x = jax.random.normal(kx, (B, C, N), jnp.float32)
    params = init_params(C, kp)

    out = ascn_forward(x, params)
    jax.block_until_ready(out)
    assert out.shape == (B, C, N) and out.dtype == jnp.float32
    print("KERNEL_OK")
</pallas_src>

<mosaic_0001>
module attributes {stable_mosaic.version = 11 : i64} {
  func.func @ascn_kernel(%arg0: memref<32x128xf32, #tpu.memory_space<vmem>>, %arg1: memref<32x32xf32, #tpu.memory_space<vmem>>, %arg2: memref<32x32xf32, #tpu.memory_space<vmem>>, %arg3: memref<32x1xf32, #tpu.memory_space<vmem>>, %arg4: memref<32x32xf32, #tpu.memory_space<vmem>>, %arg5: memref<32x1xf32, #tpu.memory_space<vmem>>, %arg6: memref<32x1xf32, #tpu.memory_space<vmem>>, %arg7: memref<32x128xf32, #tpu.memory_space<vmem>>) attributes {dimension_semantics = [], scalar_prefetch = 0 : i64, scratch_operands = 0 : i64, tpu.core_type = #tpu.core_type<tc>} {
    %c0 = arith.constant 0 : index
    %c0_0 = arith.constant 0 : index
    %0 = vector.load %arg0[%c0, %c0_0] : memref<32x128xf32, #tpu.memory_space<vmem>>, vector<32x128xf32>
    %c0_1 = arith.constant 0 : index
    %c0_2 = arith.constant 0 : index
    %1 = vector.load %arg1[%c0_1, %c0_2] : memref<32x32xf32, #tpu.memory_space<vmem>>, vector<32x32xf32>
    %c0_3 = arith.constant 0 : index
    %c0_4 = arith.constant 0 : index
    %2 = vector.load %arg2[%c0_3, %c0_4] : memref<32x32xf32, #tpu.memory_space<vmem>>, vector<32x32xf32>
    %c0_5 = arith.constant 0 : index
    %c0_6 = arith.constant 0 : index
    %3 = vector.load %arg3[%c0_5, %c0_6] : memref<32x1xf32, #tpu.memory_space<vmem>>, vector<32x1xf32>
    %c0_7 = arith.constant 0 : index
    %c0_8 = arith.constant 0 : index
    %4 = vector.load %arg4[%c0_7, %c0_8] : memref<32x32xf32, #tpu.memory_space<vmem>>, vector<32x32xf32>
    %c0_9 = arith.constant 0 : index
    %c0_10 = arith.constant 0 : index
    %5 = vector.load %arg5[%c0_9, %c0_10] : memref<32x1xf32, #tpu.memory_space<vmem>>, vector<32x1xf32>
    %c0_11 = arith.constant 0 : index
    %c0_12 = arith.constant 0 : index
    %6 = vector.load %arg6[%c0_11, %c0_12] : memref<32x1xf32, #tpu.memory_space<vmem>>, vector<32x1xf32>
    %cst = arith.constant dense<0.000000e+00> : vector<32x128xf32>
    %7 = tpu.matmul %2, %0, %cst {dimension_numbers = #tpu.dot_dimension_numbers<[1], [0], [0], [1], [0, 0, 1, 1], [], []>} : vector<32x32xf32>, vector<32x128xf32>, vector<32x128xf32> -> vector<32x128xf32>
    %8 = vector.broadcast %3 : vector<32x1xf32> to vector<32x128xf32>
    %9 = arith.addf %7, %8 : vector<32x128xf32>
    %cst_13 = arith.constant dense<0.000000e+00> : vector<32x128xf32>
    %10 = tpu.matmul %1, %0, %cst_13 {dimension_numbers = #tpu.dot_dimension_numbers<[1], [0], [0], [1], [0, 0, 1, 1], [], []>} : vector<32x32xf32>, vector<32x128xf32>, vector<32x128xf32> -> vector<32x128xf32>
    %11 = vector.extract_strided_slice %0 {offsets = [0, 0], sizes = [32, 64], strides = [1, 1]} : vector<32x128xf32> to vector<32x64xf32>
    %12 = vector.extract_strided_slice %10 {offsets = [0, 0], sizes = [32, 64], strides = [1, 1]} : vector<32x128xf32> to vector<32x64xf32>
    %13 = vector.extract_strided_slice %9 {offsets = [0, 0], sizes = [32, 64], strides = [1, 1]} : vector<32x128xf32> to vector<32x64xf32>
    %cst_14 = arith.constant dense<0.000000e+00> : vector<64x64xf32>
    %14 = tpu.matmul %11, %12, %cst_14 {dimension_numbers = #tpu.dot_dimension_numbers<[0], [0], [1], [1], [0, 1, 1, 1], [], []>} : vector<32x64xf32>, vector<32x64xf32>, vector<64x64xf32> -> vector<64x64xf32>
    %cst_15 = arith.constant dense<0xFF800000> : vector<64xf32>
    %15 = vector.multi_reduction <maximumf>, %14, %cst_15 [1] : vector<64x64xf32> to vector<64xf32>
    %16 = vector.shape_cast %15 : vector<64xf32> to vector<64x1xf32>
    %17 = vector.broadcast %16 : vector<64x1xf32> to vector<64x64xf32>
    %18 = arith.subf %14, %17 : vector<64x64xf32>
    %19 = math.exp %18 : vector<64x64xf32>
    %cst_16 = arith.constant dense<0.000000e+00> : vector<64xf32>
    %20 = vector.multi_reduction <add>, %19, %cst_16 [1] : vector<64x64xf32> to vector<64xf32>
    %21 = vector.shape_cast %20 : vector<64xf32> to vector<64x1xf32>
    %22 = tpu.reciprocal %21 {approx = true} : vector<64x1xf32> -> vector<64x1xf32>
    %23 = vector.broadcast %22 : vector<64x1xf32> to vector<64x64xf32>
    %24 = arith.mulf %19, %23 : vector<64x64xf32>
    %cst_17 = arith.constant dense<0.000000e+00> : vector<32x64xf32>
    %25 = tpu.matmul %13, %24, %cst_17 {dimension_numbers = #tpu.dot_dimension_numbers<[1], [0], [0], [1], [0, 0, 1, 1], [], []>} : vector<32x64xf32>, vector<64x64xf32>, vector<32x64xf32> -> vector<32x64xf32>
    %26 = vector.extract_strided_slice %0 {offsets = [0, 64], sizes = [32, 64], strides = [1, 1]} : vector<32x128xf32> to vector<32x64xf32>
    %27 = vector.extract_strided_slice %10 {offsets = [0, 64], sizes = [32, 64], strides = [1, 1]} : vector<32x128xf32> to vector<32x64xf32>
    %28 = vector.extract_strided_slice %9 {offsets = [0, 64], sizes = [32, 64], strides = [1, 1]} : vector<32x128xf32> to vector<32x64xf32>
    %cst_18 = arith.constant dense<0.000000e+00> : vector<64x64xf32>
    %29 = tpu.matmul %26, %27, %cst_18 {dimension_numbers = #tpu.dot_dimension_numbers<[0], [0], [1], [1], [0, 1, 1, 1], [], []>} : vector<32x64xf32>, vector<32x64xf32>, vector<64x64xf32> -> vector<64x64xf32>
    %cst_19 = arith.constant dense<0xFF800000> : vector<64xf32>
    %30 = vector.multi_reduction <maximumf>, %29, %cst_19 [1] : vector<64x64xf32> to vector<64xf32>
    %31 = vector.shape_cast %30 : vector<64xf32> to vector<64x1xf32>
    %32 = vector.broadcast %31 : vector<64x1xf32> to vector<64x64xf32>
    %33 = arith.subf %29, %32 : vector<64x64xf32>
    %34 = math.exp %33 : vector<64x64xf32>
    %cst_20 = arith.constant dense<0.000000e+00> : vector<64xf32>
    %35 = vector.multi_reduction <add>, %34, %cst_20 [1] : vector<64x64xf32> to vector<64xf32>
    %36 = vector.shape_cast %35 : vector<64xf32> to vector<64x1xf32>
    %37 = tpu.reciprocal %36 {approx = true} : vector<64x1xf32> -> vector<64x1xf32>
    %38 = vector.broadcast %37 : vector<64x1xf32> to vector<64x64xf32>
    %39 = arith.mulf %34, %38 : vector<64x64xf32>
    %cst_21 = arith.constant dense<0.000000e+00> : vector<32x64xf32>
    %40 = tpu.matmul %28, %39, %cst_21 {dimension_numbers = #tpu.dot_dimension_numbers<[1], [0], [0], [1], [0, 0, 1, 1], [], []>} : vector<32x64xf32>, vector<64x64xf32>, vector<32x64xf32> -> vector<32x64xf32>
    %41 = tpu.concatenate %25, %40 in 1 : vector<32x64xf32>, vector<32x64xf32> -> vector<32x128xf32>
    %cst_22 = arith.constant dense<0.000000e+00> : vector<32x128xf32>
    %42 = tpu.matmul %4, %41, %cst_22 {dimension_numbers = #tpu.dot_dimension_numbers<[1], [0], [0], [1], [0, 0, 1, 1], [], []>} : vector<32x32xf32>, vector<32x128xf32>, vector<32x128xf32> -> vector<32x128xf32>
    %cst_23 = arith.constant dense<0.000000e+00> : vector<32xf32>
    %43 = vector.multi_reduction <add>, %42, %cst_23 [1] : vector<32x128xf32> to vector<32xf32>
    %44 = vector.shape_cast %43 : vector<32xf32> to vector<32x1xf32>
    %45 = arith.mulf %42, %42 : vector<32x128xf32>
    %cst_24 = arith.constant dense<0.000000e+00> : vector<32xf32>
    %46 = vector.multi_reduction <add>, %45, %cst_24 [1] : vector<32x128xf32> to vector<32xf32>
    %47 = vector.shape_cast %46 : vector<32xf32> to vector<32x1xf32>
    %cst_25 = arith.constant 7.812500e-03 : f32
    %48 = vector.broadcast %cst_25 : f32 to vector<32x1xf32>
    %49 = arith.mulf %44, %48 : vector<32x1xf32>
    %cst_26 = arith.constant 7.812500e-03 : f32
    %50 = vector.broadcast %cst_26 : f32 to vector<32x1xf32>
    %51 = arith.mulf %47, %50 : vector<32x1xf32>
    %52 = arith.mulf %49, %49 : vector<32x1xf32>
    %53 = arith.subf %51, %52 : vector<32x1xf32>
    %cst_27 = arith.constant 9.99999974E-6 : f32
    %54 = vector.broadcast %cst_27 : f32 to vector<32x1xf32>
    %55 = arith.addf %53, %54 : vector<32x1xf32>
    %56 = math.rsqrt %55 : vector<32x1xf32>
    %57 = arith.mulf %56, %5 : vector<32x1xf32>
    %58 = vector.broadcast %49 : vector<32x1xf32> to vector<32x128xf32>
    %59 = arith.subf %42, %58 : vector<32x128xf32>
    %60 = vector.broadcast %57 : vector<32x1xf32> to vector<32x128xf32>
    %61 = arith.mulf %59, %60 : vector<32x128xf32>
    %62 = vector.broadcast %6 : vector<32x1xf32> to vector<32x128xf32>
    %63 = arith.addf %61, %62 : vector<32x128xf32>
    %cst_28 = arith.constant 0.000000e+00 : f32
    %64 = vector.broadcast %cst_28 : f32 to vector<32x128xf32>
    %65 = arith.maximumf %63, %64 : vector<32x128xf32>
    %66 = arith.addf %9, %65 : vector<32x128xf32>
    %c0_29 = arith.constant 0 : index
    %c0_30 = arith.constant 0 : index
    %67 = vector.load %arg7[%c0_29, %c0_30] : memref<32x128xf32, #tpu.memory_space<vmem>>, vector<32x128xf32>
    tpu.vector_store %arg7[%c0_29, %c0_30], %66 {strides = array<i32>} : memref<32x128xf32, #tpu.memory_space<vmem>>, vector<32x128xf32>,
    return
  }
}

</mosaic_0001>

<llo_original>
// kernel: ascn_forward.1
$region0: #{ascn_forward.1}
  #allocation0 [shape = 'u32[]', space=smem, size = 0x4, offset = 0x4, fixed_abs, tag = 'smem constant byte address 0x4 - core index']
  #allocation1 [shape = 'u32[72,128]{1,0:T(1,128)}', space=vmem, size = 0x9000, scoped, tag = 'internal scratch']
  %s0 = inlined_call_operand.vmem [shape: f32[32,128], index: 0, kind: input, shape index: {}]
  %s1 = inlined_call_operand.vmem [shape: f32[32,32], index: 1, kind: input, shape index: {}]
  %s2 = inlined_call_operand.vmem [shape: f32[32,32], index: 2, kind: input, shape index: {}]
  %s3 = inlined_call_operand.vmem [shape: f32[32,1], index: 3, kind: input, shape index: {}]
  %s4 = inlined_call_operand.vmem [shape: f32[32,32], index: 4, kind: input, shape index: {}]
  %s5 = inlined_call_operand.vmem [shape: f32[32,1], index: 5, kind: input, shape index: {}]
  %s6 = inlined_call_operand.vmem [shape: f32[32,1], index: 6, kind: input, shape index: {}]
  %s7 = inlined_call_operand.vmem [shape: f32[32,128], index: 7, kind: output, shape index: {}]
  %s8 = sld [smem:[#allocation0]]
  $region38: #{ascn_forward.1} parent=0
    _
  %s10 = ssub.s32 1, %s8
  %s11 = scalar_select 0, %s10, %s8
  // Predicated region
  $region2: #{ascn_forward.1} parent=0 // pred_check
    _
  $region3: #{ascn_forward.1} parent=0 // pred_check_branch
    %13 = sbr.rel (0) target = $region5
  $region4: #{ascn_forward.1} parent=0 // pred_region
    _
  $region5: #{ascn_forward.1} parent=0 // pred_fallthru
    _
  // Predicated region
  $region6: #{ascn_forward.1} parent=0 // pred_check
    _
  $region7: #{ascn_forward.1} parent=0 // pred_check_branch
    %15 = sbr.rel (0) target = $region9
  $region8: #{ascn_forward.1} parent=0 // pred_region
    _
  $region9: #{ascn_forward.1} parent=0 // pred_fallthru
    _
  // Predicated region
  $region10: #{ascn_forward.1} parent=0 // pred_check
    _
  $region11: #{ascn_forward.1} parent=0 // pred_check_branch
    %17 = sbr.rel (0) target = $region13
  $region12: #{ascn_forward.1} parent=0 // pred_region
    _
  $region13: #{ascn_forward.1} parent=0 // pred_fallthru
    _
  // Predicated region
  $region14: #{ascn_forward.1} parent=0 // pred_check
    _
  $region15: #{ascn_forward.1} parent=0 // pred_check_branch
    %19 = sbr.rel (0) target = $region17
  $region16: #{ascn_forward.1} parent=0 // pred_region
    _
  $region17: #{ascn_forward.1} parent=0 // pred_fallthru
    _
  // Predicated region
  $region18: #{ascn_forward.1} parent=0 // pred_check
    _
  $region19: #{ascn_forward.1} parent=0 // pred_check_branch
    %21 = sbr.rel (0) target = $region21
  $region20: #{ascn_forward.1} parent=0 // pred_region
    _
  $region21: #{ascn_forward.1} parent=0 // pred_fallthru
    _
  // Predicated region
  $region22: #{ascn_forward.1} parent=0 // pred_check
    _
  $region23: #{ascn_forward.1} parent=0 // pred_check_branch
    %23 = sbr.rel (0) target = $region25
  $region24: #{ascn_forward.1} parent=0 // pred_region
    _
  $region25: #{ascn_forward.1} parent=0 // pred_fallthru
    _
  // Predicated region
  $region26: #{ascn_forward.1} parent=0 // pred_check
    _
  $region27: #{ascn_forward.1} parent=0 // pred_check_branch
    %25 = sbr.rel (0) target = $region29
  $region28: #{ascn_forward.1} parent=0 // pred_region
    _
  $region29: #{ascn_forward.1} parent=0 // pred_fallthru
    _
  %v26 = vld [vmem:[%s0] sm:$0xff]
  %v27 = vld [vmem:[%s0 + $0x8] sm:$0xff]
  %v28 = vld [vmem:[%s0 + $0x10] sm:$0xff]
  %v29 = vld [vmem:[%s0 + $0x18] sm:$0xff]
  %v30 = vld [vmem:[%s1] sm:$0xff]
  %v31 = vld [vmem:[%s1 + $0x8] sm:$0xff]
  %v32 = vld [vmem:[%s1 + $0x10] sm:$0xff]
  %v33 = vld [vmem:[%s1 + $0x18] sm:$0xff]
  %v34 = vld [vmem:[%s2] sm:$0xff]
  %v35 = vld [vmem:[%s2 + $0x8] sm:$0xff]
  %v36 = vld [vmem:[%s2 + $0x10] sm:$0xff]
  %v37 = vld [vmem:[%s2 + $0x18] sm:$0xff]
  %v38 = vld [vmem:[%s3] sm:$0xff]
  %v39 = vld [vmem:[%s3 + $0x8] sm:$0xff]
  %v40 = vld [vmem:[%s3 + $0x10] sm:$0xff]
  %v41 = vld [vmem:[%s3 + $0x18] sm:$0xff]
  %v42 = vld [vmem:[%s4] sm:$0xff]
  %v43 = vld [vmem:[%s4 + $0x8] sm:$0xff]
  %v44 = vld [vmem:[%s4 + $0x10] sm:$0xff]
  %v45 = vld [vmem:[%s4 + $0x18] sm:$0xff]
  %v46 = vld [vmem:[%s5] sm:$0xff]
  %v47 = vld [vmem:[%s5 + $0x8] sm:$0xff]
  %v48 = vld [vmem:[%s5 + $0x10] sm:$0xff]
  %v49 = vld [vmem:[%s5 + $0x18] sm:$0xff]
  %v50 = vld [vmem:[%s6] sm:$0xff]
  %v51 = vld [vmem:[%s6 + $0x8] sm:$0xff]
  %v52 = vld [vmem:[%s6 + $0x10] sm:$0xff]
  %v53 = vld [vmem:[%s6 + $0x18] sm:$0xff]
  %55 = vset.pattern.permute.xlu0 0
  %56 = vperm.xlu0 %55, %v38
  %v57 = vpop.permute.xlu0 %56
  %60 = vset.pattern.permute.xlu0 0
  %61 = vperm.xlu0 %60, %v39
  %v62 = vpop.permute.xlu0 %61
  %65 = vset.pattern.permute.xlu0 0
  %66 = vperm.xlu0 %65, %v40
  %v67 = vpop.permute.xlu0 %66
  %70 = vset.pattern.permute.xlu0 0
  %71 = vperm.xlu0 %70, %v41
  %v72 = vpop.permute.xlu0 %71
  %vm74 = vcmask 261120
  %v76 = vsel %vm74, %v34, 0
  %v79 = vsel %vm74, %v35, 0
  %v82 = vsel %vm74, %v36, 0
  %v85 = vsel %vm74, %v37, 0
  %87 = vmatpush.msra.mxu0 0.0
  %88 = vmatpush.msra.mxu0 0.0
  %89 = vmatpush.msra.mxu0 0.0
  %90 = vmatpush.msra.mxu0 0.0
  %91 = vmatpush.msra.mxu0 0.0
  %92 = vmatpush.msra.mxu0 0.0
  %93 = vmatpush.msra.mxu0 0.0
  %94 = vmatpush.msra.mxu0 0.0
  %95 = vmatpush.msra.mxu0 0.0
  %96 = vmatpush.msra.mxu0 0.0
  %97 = vmatpush.msra.mxu0 0.0
  %98 = vmatpush.msra.mxu0 0.0
  %99 = vmatpush.msra.mxu0 %v29
  %100 = vmatpush.msra.mxu0 %v28
  %101 = vmatpush.msra.mxu0 %v27
  %102 = vmatpush.msra.mxu0 %v26
  %103 = vmatmul.f32.gmra.mxu0 %v76
  %v104 = vpop.f32.mrf.mxu0
  %v105 = vadd.f32 %v57, %v104
  %106 = vmatmul.f32.gmra.mxu0 %v79
  %v107 = vpop.f32.mrf.mxu0
  %v108 = vadd.f32 %v62, %v107
  %109 = vmatmul.f32.gmra.mxu0 %v82
  %v110 = vpop.f32.mrf.mxu0
  %v111 = vadd.f32 %v67, %v110
  %112 = vmatmul.f32.gmra.mxu0 %v85
  %v113 = vpop.f32.mrf.mxu0
  %v114 = vadd.f32 %v72, %v113
  %115 = vdwg.mxu0
  %v117 = vsel %vm74, %v30, 0
  %v120 = vsel %vm74, %v31, 0
  %v123 = vsel %vm74, %v32, 0
  %v126 = vsel %vm74, %v33, 0
  %128 = vmatpush.msra.mxu0 0.0
  %129 = vmatpush.msra.mxu0 0.0
  %130 = vmatpush.msra.mxu0 0.0
  %131 = vmatpush.msra.mxu0 0.0
  %132 = vmatpush.msra.mxu0 0.0
  %133 = vmatpush.msra.mxu0 0.0
  %134 = vmatpush.msra.mxu0 0.0
  %135 = vmatpush.msra.mxu0 0.0
  %136 = vmatpush.msra.mxu0 0.0
  %137 = vmatpush.msra.mxu0 0.0
  %138 = vmatpush.msra.mxu0 0.0
  %139 = vmatpush.msra.mxu0 0.0
  %140 = vmatpush.msra.mxu0 %v29
  %141 = vmatpush.msra.mxu0 %v28
  %142 = vmatpush.msra.mxu0 %v27
  %143 = vmatpush.msra.mxu0 %v26
  %144 = vmatmul.f32.gmra.mxu0 %v117
  %v145 = vpop.f32.mrf.mxu0
  %v146 = vadd.f32 0.0, %v145
  %147 = vmatmul.f32.gmra.mxu0 %v120
  %v148 = vpop.f32.mrf.mxu0
  %v149 = vadd.f32 0.0, %v148
  %150 = vmatmul.f32.gmra.mxu0 %v123
  %v151 = vpop.f32.mrf.mxu0
  %v152 = vadd.f32 0.0, %v151
  %153 = vmatmul.f32.gmra.mxu0 %v126
  %v154 = vpop.f32.mrf.mxu0
  %v155 = vadd.f32 0.0, %v154
  %156 = vdwg.mxu0
  %157 = vxpose.xlu0.b32.start [1/16] %v26, 128
  %158 = vxpose.xlu0.b32.cont [2/16] %v27, 128
  %159 = vxpose.xlu0.b32.cont [3/16] %v28, 128
  %160 = vxpose.xlu0.b32.cont [4/16] %v29, 128
  %161 = vxpose.xlu0.b32.cont [5/16] 0.0, 128
  %162 = vxpose.xlu0.b32.cont [6/16] 0.0, 128
  %163 = vxpose.xlu0.b32.cont [7/16] 0.0, 128
  %164 = vxpose.xlu0.b32.cont [8/16] 0.0, 128
  %165 = vxpose.xlu0.b32.cont [9/16] 0.0, 128
  %166 = vxpose.xlu0.b32.cont [10/16] 0.0, 128
  %167 = vxpose.xlu0.b32.cont [11/16] 0.0, 128
  %168 = vxpose.xlu0.b32.cont [12/16] 0.0, 128
  %169 = vxpose.xlu0.b32.cont [13/16] 0.0, 128
  %170 = vxpose.xlu0.b32.cont [14/16] 0.0, 128
  %171 = vxpose.xlu0.b32.cont [15/16] 0.0, 128
  %172 = vxpose.xlu0.b32.end [16/16] 0.0, 128
  %v173 = vpop.trf.xlu0
  %v174 = vpop.trf.xlu0
  %v175 = vpop.trf.xlu0
  %v176 = vpop.trf.xlu0
  %v177 = vpop.trf.xlu0
  %v178 = vpop.trf.xlu0
  %v179 = vpop.trf.xlu0
  %v180 = vpop.trf.xlu0
  %v181 = vpop.trf.xlu0
  %v182 = vpop.trf.xlu0
  %v183 = vpop.trf.xlu0
  %v184 = vpop.trf.xlu0
  %v185 = vpop.trf.xlu0
  %v186 = vpop.trf.xlu0
  %v187 = vpop.trf.xlu0
  %v188 = vpop.trf.xlu0
  %v190 = vsel %vm74, %v173, 0
  %v193 = vsel %vm74, %v174, 0
  %v196 = vsel %vm74, %v175, 0
  %v199 = vsel %vm74, %v176, 0
  %v202 = vsel %vm74, %v177, 0
  %v205 = vsel %vm74, %v178, 0
  %v208 = vsel %vm74, %v179, 0
  %v211 = vsel %vm74, %v180, 0
  %213 = vmatpush.msra.mxu0 0.0
  %214 = vmatpush.msra.mxu0 0.0
  %215 = vmatpush.msra.mxu0 0.0
  %216 = vmatpush.msra.mxu0 0.0
  %217 = vmatpush.msra.mxu0 0.0
  %218 = vmatpush.msra.mxu0 0.0
  %219 = vmatpush.msra.mxu0 0.0
  %220 = vmatpush.msra.mxu0 0.0
  %221 = vmatpush.msra.mxu0 0.0
  %222 = vmatpush.msra.mxu0 0.0
  %223 = vmatpush.msra.mxu0 0.0
  %224 = vmatpush.msra.mxu0 0.0
  %225 = vmatpush.msra.mxu0 %v155
  %226 = vmatpush.msra.mxu0 %v152
  %227 = vmatpush.msra.mxu0 %v149
  %228 = vmatpush.msra.mxu0 %v146
  %229 = vmatmul.f32.gmra.mxu0 %v190
  %v230 = vpop.f32.mrf.mxu0
  %v231 = vadd.f32 0.0, %v230
  %232 = vmatmul.f32.gmra.mxu0 %v193
  %v233 = vpop.f32.mrf.mxu0
  %v234 = vadd.f32 0.0, %v233
  %235 = vmatmul.f32.gmra.mxu0 %v196
  %v236 = vpop.f32.mrf.mxu0
  %v237 = vadd.f32 0.0, %v236
  %238 = vmatmul.f32.gmra.mxu0 %v199
  %v239 = vpop.f32.mrf.mxu0
  %v240 = vadd.f32 0.0, %v239
  %241 = vmatmul.f32.gmra.mxu0 %v202
  %v242 = vpop.f32.mrf.mxu0
  %v243 = vadd.f32 0.0, %v242
  %244 = vmatmul.f32.gmra.mxu0 %v205
  %v245 = vpop.f32.mrf.mxu0
  %v246 = vadd.f32 0.0, %v245
  %247 = vmatmul.f32.gmra.mxu0 %v208
  %v248 = vpop.f32.mrf.mxu0
  %v249 = vadd.f32 0.0, %v248
  %250 = vmatmul.f32.gmra.mxu0 %v211
  %v251 = vpop.f32.mrf.mxu0
  %v252 = vadd.f32 0.0, %v251
  %253 = vdwg.mxu0
  %vm254 = vcmask 523264
  %v255 = vsel %vm254, %v231, -inf
  %256 = vmax.xlane.f32.xlu0 %v255
  %v257 = vpop.xlane.xlu0 %256
  %v258 = vsel %vm254, %v234, -inf
  %259 = vmax.xlane.f32.xlu0 %v258
  %v260 = vpop.xlane.xlu0 %259
  %v261 = vsel %vm254, %v237, -inf
  %262 = vmax.xlane.f32.xlu0 %v261
  %v263 = vpop.xlane.xlu0 %262
  %v264 = vsel %vm254, %v240, -inf
  %265 = vmax.xlane.f32.xlu0 %v264
  %v266 = vpop.xlane.xlu0 %265
  %v267 = vsel %vm254, %v243, -inf
  %268 = vmax.xlane.f32.xlu0 %v267
  %v269 = vpop.xlane.xlu0 %268
  %v270 = vsel %vm254, %v246, -inf
  %271 = vmax.xlane.f32.xlu0 %v270
  %v272 = vpop.xlane.xlu0 %271
  %v273 = vsel %vm254, %v249, -inf
  %274 = vmax.xlane.f32.xlu0 %v273
  %v275 = vpop.xlane.xlu0 %274
  %v276 = vsel %vm254, %v252, -inf
  %277 = vmax.xlane.f32.xlu0 %v276
  %v278 = vpop.xlane.xlu0 %277
  %v279 = vsub.f32 %v231, %v257
  %v280 = vsub.f32 %v234, %v260
  %v281 = vsub.f32 %v237, %v263
  %v282 = vsub.f32 %v240, %v266
  %v283 = vsub.f32 %v243, %v269
  %v284 = vsub.f32 %v246, %v272
  %v285 = vsub.f32 %v249, %v275
  %v286 = vsub.f32 %v252, %v278
  %v287 = vmul.f32 %v279, 1.442695
  %v288 = vpow.pop %v287
  %v289 = vmul.f32 %v280, 1.442695
  %v290 = vpow.pop %v289
  %v291 = vmul.f32 %v281, 1.442695
  %v292 = vpow.pop %v291
  %v293 = vmul.f32 %v282, 1.442695
  %v294 = vpow.pop %v293
  %v295 = vmul.f32 %v283, 1.442695
  %v296 = vpow.pop %v295
  %v297 = vmul.f32 %v284, 1.442695
  %v298 = vpow.pop %v297
  %v299 = vmul.f32 %v285, 1.442695
  %v300 = vpow.pop %v299
  %v301 = vmul.f32 %v286, 1.442695
  %v302 = vpow.pop %v301
  %v303 = vsel %vm254, %v288, 0.0
  %304 = vadd.xlane.f32.xlu0 %v303
  %v305 = vpop.xlane.xlu0 %304
  %v306 = vsel %vm254, %v290, 0.0
  %307 = vadd.xlane.f32.xlu0 %v306
  %v308 = vpop.xlane.xlu0 %307
  %v309 = vsel %vm254, %v292, 0.0
  %310 = vadd.xlane.f32.xlu0 %v309
  %v311 = vpop.xlane.xlu0 %310
  %v312 = vsel %vm254, %v294, 0.0
  %313 = vadd.xlane.f32.xlu0 %v312
  %v314 = vpop.xlane.xlu0 %313
  %v315 = vsel %vm254, %v296, 0.0
  %316 = vadd.xlane.f32.xlu0 %v315
  %v317 = vpop.xlane.xlu0 %316
  %v318 = vsel %vm254, %v298, 0.0
  %319 = vadd.xlane.f32.xlu0 %v318
  %v320 = vpop.xlane.xlu0 %319
  %v321 = vsel %vm254, %v300, 0.0
  %322 = vadd.xlane.f32.xlu0 %v321
  %v323 = vpop.xlane.xlu0 %322
  %v324 = vsel %vm254, %v302, 0.0
  %325 = vadd.xlane.f32.xlu0 %v324
  %v326 = vpop.xlane.xlu0 %325
  %v327 = vrcp.pop %v305
  %v328 = vrcp.pop %v308
  %v329 = vrcp.pop %v311
  %v330 = vrcp.pop %v314
  %v331 = vrcp.pop %v317
  %v332 = vrcp.pop %v320
  %v333 = vrcp.pop %v323
  %v334 = vrcp.pop %v326
  %v335 = vmul.f32 %v288, %v327
  %v336 = vmul.f32 %v290, %v328
  %v337 = vmul.f32 %v292, %v329
  %v338 = vmul.f32 %v294, %v330
  %v339 = vmul.f32 %v296, %v331
  %v340 = vmul.f32 %v298, %v332
  %v341 = vmul.f32 %v300, %v333
  %v342 = vmul.f32 %v302, %v334
  %v344 = vsel %vm254, %v105, 0
  %v347 = vsel %vm254, %v108, 0
  %v350 = vsel %vm254, %v111, 0
  %v353 = vsel %vm254, %v114, 0
  %355 = vmatpush.msra.mxu0 0.0
  %356 = vmatpush.msra.mxu0 0.0
  %357 = vmatpush.msra.mxu0 0.0
  %358 = vmatpush.msra.mxu0 0.0
  %359 = vmatpush.msra.mxu0 0.0
  %360 = vmatpush.msra.mxu0 0.0
  %361 = vmatpush.msra.mxu0 0.0
  %362 = vmatpush.msra.mxu0 0.0
  %363 = vmatpush.msra.mxu0 %v342
  %364 = vmatpush.msra.mxu0 %v341
  %365 = vmatpush.msra.mxu0 %v340
  %366 = vmatpush.msra.mxu0 %v339
  %367 = vmatpush.msra.mxu0 %v338
  %368 = vmatpush.msra.mxu0 %v337
  %369 = vmatpush.msra.mxu0 %v336
  %370 = vmatpush.msra.mxu0 %v335
  %371 = vmatmul.f32.gmra.mxu0 %v344
  %v372 = vpop.f32.mrf.mxu0
  %v373 = vadd.f32 0.0, %v372
  %374 = vmatmul.f32.gmra.mxu0 %v347
  %v375 = vpop.f32.mrf.mxu0
  %v376 = vadd.f32 0.0, %v375
  %377 = vmatmul.f32.gmra.mxu0 %v350
  %v378 = vpop.f32.mrf.mxu0
  %v379 = vadd.f32 0.0, %v378
  %380 = vmatmul.f32.gmra.mxu0 %v353
  %v381 = vpop.f32.mrf.mxu0
  %v382 = vadd.f32 0.0, %v381
  %383 = vdwg.mxu0
  %388 = vrot.lane.b32.xlu0 %v26, 64
  %v389 = vpop.permute.xlu0 %388
  %390 = vrot.lane.b32.xlu0 %v27, 64
  %v391 = vpop.permute.xlu0 %390
  %392 = vrot.lane.b32.xlu0 %v28, 64
  %v393 = vpop.permute.xlu0 %392
  %394 = vrot.lane.b32.xlu0 %v29, 64
  %v395 = vpop.permute.xlu0 %394
  %400 = vxpose.xlu0.b32.start [1/16] %v389, 128
  %401 = vxpose.xlu0.b32.cont [2/16] %v391, 128
  %402 = vxpose.xlu0.b32.cont [3/16] %v393, 128
  %403 = vxpose.xlu0.b32.cont [4/16] %v395, 128
  %404 = vxpose.xlu0.b32.cont [5/16] 0.0, 128
  %405 = vxpose.xlu0.b32.cont [6/16] 0.0, 128
  %406 = vxpose.xlu0.b32.cont [7/16] 0.0, 128
  %407 = vxpose.xlu0.b32.cont [8/16] 0.0, 128
  %408 = vxpose.xlu0.b32.cont [9/16] 0.0, 128
  %409 = vxpose.xlu0.b32.cont [10/16] 0.0, 128
  %410 = vxpose.xlu0.b32.cont [11/16] 0.0, 128
  %411 = vxpose.xlu0.b32.cont [12/16] 0.0, 128
  %412 = vxpose.xlu0.b32.cont [13/16] 0.0, 128
  %413 = vxpose.xlu0.b32.cont [14/16] 0.0, 128
  %414 = vxpose.xlu0.b32.cont [15/16] 0.0, 128
  %415 = vxpose.xlu0.b32.end [16/16] 0.0, 128
  %v416 = vpop.trf.xlu0
  %v417 = vpop.trf.xlu0
  %v418 = vpop.trf.xlu0
  %v419 = vpop.trf.xlu0
  %v420 = vpop.trf.xlu0
  %v421 = vpop.trf.xlu0
  %v422 = vpop.trf.xlu0
  %v423 = vpop.trf.xlu0
  %v424 = vpop.trf.xlu0
  %v425 = vpop.trf.xlu0
  %v426 = vpop.trf.xlu0
  %v427 = vpop.trf.xlu0
  %v428 = vpop.trf.xlu0
  %v429 = vpop.trf.xlu0
  %v430 = vpop.trf.xlu0
  %v431 = vpop.trf.xlu0
  %436 = vrot.lane.b32.xlu0 %v146, 64
  %v437 = vpop.permute.xlu0 %436
  %438 = vrot.lane.b32.xlu0 %v149, 64
  %v439 = vpop.permute.xlu0 %438
  %440 = vrot.lane.b32.xlu0 %v152, 64
  %v441 = vpop.permute.xlu0 %440
  %442 = vrot.lane.b32.xlu0 %v155, 64
  %v443 = vpop.permute.xlu0 %442
  %v449 = vsel %vm74, %v416, 0
  %v452 = vsel %vm74, %v417, 0
  %v455 = vsel %vm74, %v418, 0
  %v458 = vsel %vm74, %v419, 0
  %v461 = vsel %vm74, %v420, 0
  %v464 = vsel %vm74, %v421, 0
  %v467 = vsel %vm74, %v422, 0
  %v470 = vsel %vm74, %v423, 0
  %472 = vmatpush.msra.mxu0 0.0
  %473 = vmatpush.msra.mxu0 0.0
  %474 = vmatpush.msra.mxu0 0.0
  %475 = vmatpush.msra.mxu0 0.0
  %476 = vmatpush.msra.mxu0 0.0
  %477 = vmatpush.msra.mxu0 0.0
  %478 = vmatpush.msra.mxu0 0.0
  %479 = vmatpush.msra.mxu0 0.0
  %480 = vmatpush.msra.mxu0 0.0
  %481 = vmatpush.msra.mxu0 0.0
  %482 = vmatpush.msra.mxu0 0.0
  %483 = vmatpush.msra.mxu0 0.0
  %484 = vmatpush.msra.mxu0 %v443
  %485 = vmatpush.msra.mxu0 %v441
  %486 = vmatpush.msra.mxu0 %v439
  %487 = vmatpush.msra.mxu0 %v437
  %488 = vmatmul.f32.gmra.mxu0 %v449
  %v489 = vpop.f32.mrf.mxu0
  %v490 = vadd.f32 0.0, %v489
  %491 = vmatmul.f32.gmra.mxu0 %v452
  %v492 = vpop.f32.mrf.mxu0
  %v493 = vadd.f32 0.0, %v492
  %494 = vmatmul.f32.gmra.mxu0 %v455
  %v495 = vpop.f32.mrf.mxu0
  %v496 = vadd.f32 0.0, %v495
  %497 = vmatmul.f32.gmra.mxu0 %v458
  %v498 = vpop.f32.mrf.mxu0
  %v499 = vadd.f32 0.0, %v498
  %500 = vmatmul.f32.gmra.mxu0 %v461
  %v501 = vpop.f32.mrf.mxu0
  %v502 = vadd.f32 0.0, %v501
  %503 = vmatmul.f32.gmra.mxu0 %v464
  %v504 = vpop.f32.mrf.mxu0
  %v505 = vadd.f32 0.0, %v504
  %506 = vmatmul.f32.gmra.mxu0 %v467
  %v507 = vpop.f32.mrf.mxu0
  %v508 = vadd.f32 0.0, %v507
  %509 = vmatmul.f32.gmra.mxu0 %v470
  %v510 = vpop.f32.mrf.mxu0
  %v511 = vadd.f32 0.0, %v510
  %512 = vdwg.mxu0
  %v513 = vsel %vm254, %v490, -inf
  %514 = vmax.xlane.f32.xlu0 %v513
  %v515 = vpop.xlane.xlu0 %514
  %v516 = vsel %vm254, %v493, -inf
  %517 = vmax.xlane.f32.xlu0 %v516
  %v518 = vpop.xlane.xlu0 %517
  %v519 = vsel %vm254, %v496, -inf
  %520 = vmax.xlane.f32.xlu0 %v519
  %v521 = vpop.xlane.xlu0 %520
  %v522 = vsel %vm254, %v499, -inf
  %523 = vmax.xlane.f32.xlu0 %v522
  %v524 = vpop.xlane.xlu0 %523
  %v525 = vsel %vm254, %v502, -inf
  %526 = vmax.xlane.f32.xlu0 %v525
  %v527 = vpop.xlane.xlu0 %526
  %v528 = vsel %vm254, %v505, -inf
  %529 = vmax.xlane.f32.xlu0 %v528
  %v530 = vpop.xlane.xlu0 %529
  %v531 = vsel %vm254, %v508, -inf
  %532 = vmax.xlane.f32.xlu0 %v531
  %v533 = vpop.xlane.xlu0 %532
  %v534 = vsel %vm254, %v511, -inf
  %535 = vmax.xlane.f32.xlu0 %v534
  %v536 = vpop.xlane.xlu0 %535
  %v537 = vsub.f32 %v490, %v515
  %v538 = vsub.f32 %v493, %v518
  %v539 = vsub.f32 %v496, %v521
  %v540 = vsub.f32 %v499, %v524
  %v541 = vsub.f32 %v502, %v527
  %v542 = vsub.f32 %v505, %v530
  %v543 = vsub.f32 %v508, %v533
  %v544 = vsub.f32 %v511, %v536
  %v545 = vmul.f32 %v537, 1.442695
  %v546 = vpow.pop %v545
  %v547 = vmul.f32 %v538, 1.442695
  %v548 = vpow.pop %v547
  %v549 = vmul.f32 %v539, 1.442695
  %v550 = vpow.pop %v549
  %v551 = vmul.f32 %v540, 1.442695
  %v552 = vpow.pop %v551
  %v553 = vmul.f32 %v541, 1.442695
  %v554 = vpow.pop %v553
  %v555 = vmul.f32 %v542, 1.442695
  %v556 = vpow.pop %v555
  %v557 = vmul.f32 %v543, 1.442695
  %v558 = vpow.pop %v557
  %v559 = vmul.f32 %v544, 1.442695
  %v560 = vpow.pop %v559
  %v561 = vsel %vm254, %v546, 0.0
  %562 = vadd.xlane.f32.xlu0 %v561
  %v563 = vpop.xlane.xlu0 %562
  %v564 = vsel %vm254, %v548, 0.0
  %565 = vadd.xlane.f32.xlu0 %v564
  %v566 = vpop.xlane.xlu0 %565
  %v567 = vsel %vm254, %v550, 0.0
  %568 = vadd.xlane.f32.xlu0 %v567
  %v569 = vpop.xlane.xlu0 %568
  %v570 = vsel %vm254, %v552, 0.0
  %571 = vadd.xlane.f32.xlu0 %v570
  %v572 = vpop.xlane.xlu0 %571
  %v573 = vsel %vm254, %v554, 0.0
  %574 = vadd.xlane.f32.xlu0 %v573
  %v575 = vpop.xlane.xlu0 %574
  %v576 = vsel %vm254, %v556, 0.0
  %577 = vadd.xlane.f32.xlu0 %v576
  %v578 = vpop.xlane.xlu0 %577
  %v579 = vsel %vm254, %v558, 0.0
  %580 = vadd.xlane.f32.xlu0 %v579
  %v581 = vpop.xlane.xlu0 %580
  %v582 = vsel %vm254, %v560, 0.0
  %583 = vadd.xlane.f32.xlu0 %v582
  %v584 = vpop.xlane.xlu0 %583
  %v585 = vrcp.pop %v563
  %v586 = vrcp.pop %v566
  %v587 = vrcp.pop %v569
  %v588 = vrcp.pop %v572
  %v589 = vrcp.pop %v575
  %v590 = vrcp.pop %v578
  %v591 = vrcp.pop %v581
  %v592 = vrcp.pop %v584
  %v593 = vmul.f32 %v546, %v585
  %v594 = vmul.f32 %v548, %v586
  %v595 = vmul.f32 %v550, %v587
  %v596 = vmul.f32 %v552, %v588
  %v597 = vmul.f32 %v554, %v589
  %v598 = vmul.f32 %v556, %v590
  %v599 = vmul.f32 %v558, %v591
  %v600 = vmul.f32 %v560, %v592
  %601 = vrot.lane.b32.xlu0 %v105, 64
  %v602 = vpop.permute.xlu0 %601
  %603 = vrot.lane.b32.xlu0 %v108, 64
  %v604 = vpop.permute.xlu0 %603
  %605 = vrot.lane.b32.xlu0 %v111, 64
  %v606 = vpop.permute.xlu0 %605
  %607 = vrot.lane.b32.xlu0 %v114, 64
  %v608 = vpop.permute.xlu0 %607
  %v609 = vsel %vm254, %v602, 0
  %v611 = vsel %vm254, %v604, 0
  %v613 = vsel %vm254, %v606, 0
  %v615 = vsel %vm254, %v608, 0
  %617 = vmatpush.msra.mxu0 0.0
  %618 = vmatpush.msra.mxu0 0.0
  %619 = vmatpush.msra.mxu0 0.0
  %620 = vmatpush.msra.mxu0 0.0
  %621 = vmatpush.msra.mxu0 0.0
  %622 = vmatpush.msra.mxu0 0.0
  %623 = vmatpush.msra.mxu0 0.0
  %624 = vmatpush.msra.mxu0 0.0
  %625 = vmatpush.msra.mxu0 %v600
  %626 = vmatpush.msra.mxu0 %v599
  %627 = vmatpush.msra.mxu0 %v598
  %628 = vmatpush.msra.mxu0 %v597
  %629 = vmatpush.msra.mxu0 %v596
  %630 = vmatpush.msra.mxu0 %v595
  %631 = vmatpush.msra.mxu0 %v594
  %632 = vmatpush.msra.mxu0 %v593
  %633 = vmatmul.f32.gmra.mxu0 %v609
  %v634 = vpop.f32.mrf.mxu0
  %v635 = vadd.f32 0.0, %v634
  %636 = vmatmul.f32.gmra.mxu0 %v611
  %v637 = vpop.f32.mrf.mxu0
  %v638 = vadd.f32 0.0, %v637
  %639 = vmatmul.f32.gmra.mxu0 %v613
  %v640 = vpop.f32.mrf.mxu0
  %v641 = vadd.f32 0.0, %v640
  %642 = vmatmul.f32.gmra.mxu0 %v615
  %v643 = vpop.f32.mrf.mxu0
  %v644 = vadd.f32 0.0, %v643
  %645 = vdwg.mxu0
  %650 = vrot.lane.b32.xlu0 %v635, 64
  %v651 = vpop.permute.xlu0 %650
  %652 = vrot.lane.b32.xlu0 %v638, 64
  %v653 = vpop.permute.xlu0 %652
  %654 = vrot.lane.b32.xlu0 %v641, 64
  %v655 = vpop.permute.xlu0 %654
  %656 = vrot.lane.b32.xlu0 %v644, 64
  %v657 = vpop.permute.xlu0 %656
  %v662 = vsel %vm254, %v373, %v651
  %v663 = vsel %vm254, %v376, %v653
  %v664 = vsel %vm254, %v379, %v655
  %v665 = vsel %vm254, %v382, %v657
  %v667 = vsel %vm74, %v42, 0
  %v670 = vsel %vm74, %v43, 0
  %v673 = vsel %vm74, %v44, 0
  %v676 = vsel %vm74, %v45, 0
  %678 = vmatpush.msra.mxu0 0.0
  %679 = vmatpush.msra.mxu0 0.0
  %680 = vmatpush.msra.mxu0 0.0
  %681 = vmatpush.msra.mxu0 0.0
  %682 = vmatpush.msra.mxu0 0.0
  %683 = vmatpush.msra.mxu0 0.0
  %684 = vmatpush.msra.mxu0 0.0
  %685 = vmatpush.msra.mxu0 0.0
  %686 = vmatpush.msra.mxu0 0.0
  %687 = vmatpush.msra.mxu0 0.0
  %688 = vmatpush.msra.mxu0 0.0
  %689 = vmatpush.msra.mxu0 0.0
  %690 = vmatpush.msra.mxu0 %v665
  %691 = vmatpush.msra.mxu0 %v664
  %692 = vmatpush.msra.mxu0 %v663
  %693 = vmatpush.msra.mxu0 %v662
  %694 = vmatmul.f32.gmra.mxu0 %v667
  %v695 = vpop.f32.mrf.mxu0
  %v696 = vadd.f32 0.0, %v695
  %697 = vmatmul.f32.gmra.mxu0 %v670
  %v698 = vpop.f32.mrf.mxu0
  %v699 = vadd.f32 0.0, %v698
  %700 = vmatmul.f32.gmra.mxu0 %v673
  %v701 = vpop.f32.mrf.mxu0
  %v702 = vadd.f32 0.0, %v701
  %703 = vmatmul.f32.gmra.mxu0 %v676
  %v704 = vpop.f32.mrf.mxu0
  %v705 = vadd.f32 0.0, %v704
  %706 = vdwg.mxu0
  %707 = vadd.xlane.f32.xlu0 %v696
  %v708 = vpop.xlane.xlu0 %707
  %709 = vadd.xlane.f32.xlu0 %v699
  %v710 = vpop.xlane.xlu0 %709
  %711 = vadd.xlane.f32.xlu0 %v702
  %v712 = vpop.xlane.xlu0 %711
  %713 = vadd.xlane.f32.xlu0 %v705
  %v714 = vpop.xlane.xlu0 %713
  %v715 = vmul.f32 %v696, %v696
  %v716 = vmul.f32 %v699, %v699
  %v717 = vmul.f32 %v702, %v702
  %v718 = vmul.f32 %v705, %v705
  %719 = vadd.xlane.f32.xlu0 %v715
  %v720 = vpop.xlane.xlu0 %719
  %721 = vadd.xlane.f32.xlu0 %v716
  %v722 = vpop.xlane.xlu0 %721
  %723 = vadd.xlane.f32.xlu0 %v717
  %v724 = vpop.xlane.xlu0 %723
  %725 = vadd.xlane.f32.xlu0 %v718
  %v726 = vpop.xlane.xlu0 %725
  %v727 = vmul.f32 %v708, 0.0078125
  %v728 = vmul.f32 %v710, 0.0078125
  %v729 = vmul.f32 %v712, 0.0078125
  %v730 = vmul.f32 %v714, 0.0078125
  %v731 = vmul.f32 %v720, 0.0078125
  %v732 = vmul.f32 %v722, 0.0078125
  %v733 = vmul.f32 %v724, 0.0078125
  %v734 = vmul.f32 %v726, 0.0078125
  %v735 = vmul.f32 %v727, %v727
  %v736 = vmul.f32 %v728, %v728
  %v737 = vmul.f32 %v729, %v729
  %v738 = vmul.f32 %v730, %v730
  %v739 = vsub.f32 %v731, %v735
  %v740 = vsub.f32 %v732, %v736
  %v741 = vsub.f32 %v733, %v737
  %v742 = vsub.f32 %v734, %v738
  %v743 = vadd.f32 %v739, 1e-05
  %v744 = vadd.f32 %v740, 1e-05
  %v745 = vadd.f32 %v741, 1e-05
  %v746 = vadd.f32 %v742, 1e-05
  %v747 = vrsqrt.pop %v743
  %v748 = vmul.f32 %v747, %v743
  %v749 = vmul.f32 %v748, %v747
  %v750 = vmul.f32 0.5, %v749
  %v751 = vsub.f32 1.5, %v750
  %v752 = vmul.f32 %v747, %v751
  %vm753 = vweird.f32 %v743
  %vm754 = vweird.f32 %v747
  %vm755 = vmor %vm753, %vm754
  %v756 = vsel %vm755, %v747, %v752
  %v757 = vrsqrt.pop %v744
  %v758 = vmul.f32 %v757, %v744
  %v759 = vmul.f32 %v758, %v757
  %v760 = vmul.f32 0.5, %v759
  %v761 = vsub.f32 1.5, %v760
  %v762 = vmul.f32 %v757, %v761
  %vm763 = vweird.f32 %v744
  %vm764 = vweird.f32 %v757
  %vm765 = vmor %vm763, %vm764
  %v766 = vsel %vm765, %v757, %v762
  %v767 = vrsqrt.pop %v745
  %v768 = vmul.f32 %v767, %v745
  %v769 = vmul.f32 %v768, %v767
  %v770 = vmul.f32 0.5, %v769
  %v771 = vsub.f32 1.5, %v770
  %v772 = vmul.f32 %v767, %v771
  %vm773 = vweird.f32 %v745
  %vm774 = vweird.f32 %v767
  %vm775 = vmor %vm773, %vm774
  %v776 = vsel %vm775, %v767, %v772
  %v777 = vrsqrt.pop %v746
  %v778 = vmul.f32 %v777, %v746
  %v779 = vmul.f32 %v778, %v777
  %v780 = vmul.f32 0.5, %v779
  %v781 = vsub.f32 1.5, %v780
  %v782 = vmul.f32 %v777, %v781
  %vm783 = vweird.f32 %v746
  %vm784 = vweird.f32 %v777
  %vm785 = vmor %vm783, %vm784
  %v786 = vsel %vm785, %v777, %v782
  %v787 = vmul.f32 %v756, %v46
  %v788 = vmul.f32 %v766, %v47
  %v789 = vmul.f32 %v776, %v48
  %v790 = vmul.f32 %v786, %v49
  %v791 = vsub.f32 %v696, %v727
  %v792 = vsub.f32 %v699, %v728
  %v793 = vsub.f32 %v702, %v729
  %v794 = vsub.f32 %v705, %v730
  %796 = vset.pattern.permute.xlu0 0
  %797 = vperm.xlu0 %796, %v787
  %v798 = vpop.permute.xlu0 %797
  %801 = vset.pattern.permute.xlu0 0
  %802 = vperm.xlu0 %801, %v788
  %v803 = vpop.permute.xlu0 %802
  %806 = vset.pattern.permute.xlu0 0
  %807 = vperm.xlu0 %806, %v789
  %v808 = vpop.permute.xlu0 %807
  %811 = vset.pattern.permute.xlu0 0
  %812 = vperm.xlu0 %811, %v790
  %v813 = vpop.permute.xlu0 %812
  %v815 = vmul.f32 %v791, %v798
  %v816 = vmul.f32 %v792, %v803
  %v817 = vmul.f32 %v793, %v808
  %v818 = vmul.f32 %v794, %v813
  %820 = vset.pattern.permute.xlu0 0
  %821 = vperm.xlu0 %820, %v50
  %v822 = vpop.permute.xlu0 %821
  %825 = vset.pattern.permute.xlu0 0
  %826 = vperm.xlu0 %825, %v51
  %v827 = vpop.permute.xlu0 %826
  %830 = vset.pattern.permute.xlu0 0
  %831 = vperm.xlu0 %830, %v52
  %v832 = vpop.permute.xlu0 %831
  %835 = vset.pattern.permute.xlu0 0
  %836 = vperm.xlu0 %835, %v53
  %v837 = vpop.permute.xlu0 %836
  %v839 = vadd.f32 %v815, %v822
  %v840 = vadd.f32 %v816, %v827
  %v841 = vadd.f32 %v817, %v832
  %v842 = vadd.f32 %v818, %v837
  %v843 = vmax.f32 %v839, 0.0
  %v844 = vmax.f32 %v840, 0.0
  %v845 = vmax.f32 %v841, 0.0
  %v846 = vmax.f32 %v842, 0.0
  %v847 = vadd.f32 %v105, %v843
  %v848 = vadd.f32 %v108, %v844
  %v849 = vadd.f32 %v111, %v845
  %v850 = vadd.f32 %v114, %v846
  %851 = vst [vmem:[%s7] sm:$0xff] %v847
  %852 = vst [vmem:[%s7 + $0x8] sm:$0xff] %v848
  %853 = vst [vmem:[%s7 + $0x10] sm:$0xff] %v849
  %854 = vst [vmem:[%s7 + $0x18] sm:$0xff] %v850
  // Predicated region
  $region30: #{ascn_forward.1} parent=0 // pred_check
    _
  $region31: #{ascn_forward.1} parent=0 // pred_check_branch
    %856 = sbr.rel (0) target = $region33
  $region32: #{ascn_forward.1} parent=0 // pred_region
    _
  $region33: #{ascn_forward.1} parent=0 // pred_fallthru
    _
  // Predicated region
  $region34: #{ascn_forward.1} parent=0 // pred_check
    _
  $region35: #{ascn_forward.1} parent=0 // pred_check_branch
    %858 = sbr.rel (0) target = $region37
  $region36: #{ascn_forward.1} parent=0 // pred_region
    _
  $region37: #{ascn_forward.1} parent=0 // pred_fallthru
    _

</llo_original>
